<compile_context>
chip_gen: v5e
topology: v5e:2x2
jax: 0.10.0
libtpu: 0.0.40
codegen_flags: <defaults>
</compile_context>

<pallas_src>
import functools

import jax
import jax.numpy as jnp
from jax import lax
from jax.experimental import pallas as pl
from jax.experimental.pallas import tpu as pltpu

_LANE = 128
_SUB = 8
# f32-equivalent budget for one logits block: keeps double-buffered inputs +
# the handful of full-tile f32 temporaries well inside the 32 MiB scoped VMEM
# limit that is safe on v5e/v6e/v7x alike.
_TARGET_X_BLOCK_BYTES = 2 * 1024 * 1024


def _round_up(x, m):
    return (x + m - 1) // m * m


def _round_down(x, m):
    return x // m * m


def _dice_sums_kernel(x_ref, t_ref, o_ref, *, num_classes, apply_softmax,
                      square_pred, hard_dice, lane_pad, row_mask, rows_valid,
                      r_tile, group, chunks, tiles_per_chunk):
    """One (image-chunk, spatial-tile) grid step.

    x_ref : (C, r_tile, 128)  logits in their original dtype
    t_ref : (r_tile, 128)     integer class ids (-1 on lane-padded pixels)
    o_ref : (S, C, group, 128) resident f32 accumulator
            stats: 0=intersection, 1=sum(x) or sum(x^2), 2=sum(onehot),
                   3=hard intersection, 4=sum(pred onehot)  (3,4 iff hard_dice)
    """
    C = num_classes
    k = pl.program_id(1)

    @pl.when(k == 0)
    def _init():
        o_ref[...] = jnp.zeros_like(o_ref)

    x = x_ref[...].astype(jnp.float32)          # (C, R, 128)
    t = t_ref[...].astype(jnp.int32)            # (R, 128)

    if row_mask:
        # Logical (unclamped) tile index -> mask OOB / duplicated tail rows.
        chunk = pl.program_id(0) % chunks if chunks > 1 else 0
        tile = chunk * tiles_per_chunk + k
        row0 = tile * r_tile
        rid = lax.broadcasted_iota(jnp.int32, (r_tile, _LANE), 0) + row0
        ok = rid < rows_valid                   # (R, 128) bool
        x = jnp.where(ok[None], x, 0.0)
        t = jnp.where(ok, t, -1)

    any_mask = row_mask or lane_pad
    need_valid = any_mask and (apply_softmax or hard_dice)
    validf = (t >= 0).astype(jnp.float32) if need_valid else None

    if apply_softmax:
        m = jnp.max(x, axis=0, keepdims=True)   # class-axis reduce -> VALU
        e = jnp.exp(x - m)                      # EUP
        d = jnp.sum(e, axis=0, keepdims=True)
        inv = pl.reciprocal(d, approx=True)     # EUP vrcp
        inv = inv * (2.0 - d * inv)             # one Newton step -> ~f32 exact
        p = e * inv
        if any_mask:
            p = p * validf[None]                # padded pixels contribute 0
    else:
        p = x                                   # padded logits are already 0

    if hard_dice:
        # Unrolled argmax over the (small, static) class axis; strict ">"
        # keeps first-index tie semantics (matches jnp/torch argmax).
        best = p[0]
        pred = jnp.zeros((r_tile, _LANE), jnp.int32)
        for c in range(1, C):
            better = p[c] > best
            pred = jnp.where(better, c, pred)
            best = jnp.where(better, p[c], best)

    def gsum(v):
        # (R, 128) -> (group, 128): sum 8-sublane groups, pure VALU adds
        # (the reshape splits the sublane axis at tile boundaries -> free).
        if r_tile == group:
            return v
        g = r_tile // group
        return v.reshape(g, group, _LANE).sum(axis=0)

    for c in range(C):
        oh = (t == c).astype(jnp.float32)       # (R, 128), 0 on invalid pixels
        pc = p[c]
        o_ref[0, c] = o_ref[0, c] + gsum(pc * oh)
        if square_pred:
            o_ref[1, c] = o_ref[1, c] + gsum(pc * pc)
        else:
            o_ref[1, c] = o_ref[1, c] + gsum(pc)
        o_ref[2, c] = o_ref[2, c] + gsum(oh)
        if hard_dice:
            poh = (pred == c).astype(jnp.float32)
            o_ref[3, c] = o_ref[3, c] + gsum(poh * oh)
            if need_valid:
                o_ref[4, c] = o_ref[4, c] + gsum(poh * validf)
            else:
                o_ref[4, c] = o_ref[4, c] + gsum(poh)


def dice_loss(inputs, target, num_classes=2, return_hard_dice=False,
              softmax=False, block_rows=None):
    """Forward pass matching DiceLoss.forward (dice_loss.py).

    inputs: (N, C, H, W) float logits/probabilities
    target: (N, H, W) integer class ids in [0, num_classes)
    """
    assert inputs.ndim == 4, "Input must be a 4D Tensor."
    N, C, H, W = inputs.shape
    assert C == num_classes, "Input sizes must be equal."

    HW = H * W
    hw_pad = _round_up(HW, _LANE)
    lane_pad = hw_pad != HW
    R_total = hw_pad // _LANE

    # ---- spatial tiling: rows of 128 lanes, row-tile a multiple of 8 -------
    if R_total <= _SUB:
        r_tile = R_total
        group = R_total
    else:
        want = (_TARGET_X_BLOCK_BYTES // (C * _LANE * 4)
                if block_rows is None else block_rows)
        r_tile = max(_SUB, min(_round_down(want, _SUB),
                               _round_down(R_total, _SUB)))
        group = _SUB

    T_tiles = pl.cdiv(R_total, r_tile)
    # Megacore balancing: split the spatial reduction 2-way whenever the batch
    # axis alone would leave one v7x TensorCore idle (odd / unit N).
    chunks = 2 if (N % 2 == 1 and T_tiles >= 2) else 1
    tiles_per_chunk = pl.cdiv(T_tiles, chunks)
    coverage = chunks * tiles_per_chunk * r_tile
    row_mask = coverage > R_total
    clamp_tiles = chunks * tiles_per_chunk > T_tiles

    # ---- labels: keep narrow signed ints when layout-safe, else int32 ------
    tdt = jnp.dtype(target.dtype)
    narrow_ok = (r_tile == R_total) or (r_tile % 32 == 0)
    if tdt in (jnp.dtype(jnp.int8), jnp.dtype(jnp.int16)) and narrow_ok:
        t = target
    elif tdt == jnp.dtype(jnp.int32):
        t = target
    else:
        t = target.astype(jnp.int32)

    # Logits keep their original dtype (no wrapper-side f32 upcast copy).
    x = inputs.reshape(N, C, HW)
    t = t.reshape(N, HW)
    if lane_pad:
        # TODO(synk): for HW % 128 != 0 this pad is an extra HBM copy; a fully
        # copy-free ragged-tail path would need an element-offset gather.
        x = jnp.pad(x, ((0, 0), (0, 0), (0, hw_pad - HW)))
        t = jnp.pad(t, ((0, 0), (0, hw_pad - HW)), constant_values=-1)
    x = x.reshape(N, C, R_total, _LANE)
    t = t.reshape(N, R_total, _LANE)

    num_stats = 5 if return_hard_dice else 3

    # ---- index maps --------------------------------------------------------
    if chunks == 1:
        x_map = lambda i, k: (i, 0, k, 0)
        t_map = lambda i, k: (i, k, 0)
    else:
        def _tile(i, k):
            tile = (i % chunks) * tiles_per_chunk + k
            if clamp_tiles:
                tile = jnp.minimum(tile, T_tiles - 1)  # tail dup, masked in-kernel
            return tile
        x_map = lambda i, k: (i // chunks, 0, _tile(i, k), 0)
        t_map = lambda i, k: (i // chunks, _tile(i, k), 0)
    o_map = lambda i, k: (i, 0, 0, 0, 0)

    kern = functools.partial(
        _dice_sums_kernel, num_classes=C, apply_softmax=softmax,
        square_pred=(C != 2), hard_dice=return_hard_dice, lane_pad=lane_pad,
        row_mask=row_mask, rows_valid=R_total, r_tile=r_tile, group=group,
        chunks=chunks, tiles_per_chunk=tiles_per_chunk)

    xb = C * r_tile * _LANE * jnp.dtype(inputs.dtype).itemsize
    tb = r_tile * _LANE * jnp.dtype(t.dtype).itemsize
    ob = num_stats * C * group * _LANE * 4
    est = 2 * (xb + tb) + ob + 8 * C * r_tile * _LANE * 4 + (2 << 20)
    vmem_limit = int(min(32 << 20, max(8 << 20, est)))

    sums = pl.pallas_call(
        kern,
        out_shape=jax.ShapeDtypeStruct(
            (N * chunks, num_stats, C, group, _LANE), jnp.float32),
        grid=(N * chunks, tiles_per_chunk),
        in_specs=[
            pl.BlockSpec((None, C, r_tile, _LANE), x_map),
            pl.BlockSpec((None, r_tile, _LANE), t_map),
        ],
        out_specs=pl.BlockSpec((None, num_stats, C, group, _LANE), o_map),
        compiler_params=pltpu.CompilerParams(
            dimension_semantics=("parallel", "arbitrary"),
            vmem_limit_bytes=vmem_limit,
        ),
    )(x, t)

    # Tiny epilogue in plain JAX: reduce chunk/sublane/lane axes, form ratios.
    sums = sums.reshape(N, chunks, num_stats, C, group, _LANE).sum(axis=(1, 4, 5))
    inter = sums[:, 0]
    norm = sums[:, 1]              # sum(x) if C == 2 else sum(x * x)
    sum_oh = sums[:, 2]

    eps = 1e-06
    if C == 2:
        coeff = (2.0 * inter + eps) / (norm + sum_oh + eps)
        loss = 1.0 - coeff.mean()
    else:
        I = inter.sum(axis=0)
        L = norm.sum(axis=0)
        Rr = sum_oh.sum(axis=0)
        loss = 1.0 - ((2.0 * I + eps) / (L + Rr + eps)).mean()

    if return_hard_dice:
        HI = sums[:, 3].sum(axis=0)
        HC = (sums[:, 4] + sums[:, 2]).sum(axis=0)
        hard_dice_loss = (1.0 - (2.0 * HI + eps) / (HC + eps)).mean()
        return loss, hard_dice_loss
    return loss


def _dice_loss_ref(inputs, target, num_classes=2, return_hard_dice=False, softmax=False):
    """Pure-JAX reference mirroring the PyTorch module (for verification)."""
    onehot = jax.nn.one_hot(target, num_classes, dtype=inputs.dtype)
    onehot = jnp.transpose(onehot, (0, 3, 1, 2))
    x = jax.nn.softmax(inputs, axis=1) if softmax else inputs
    eps = 1e-06
    if x.shape[1] == 2:
        I = jnp.sum(x * onehot, axis=(2, 3))
        L = jnp.sum(x, axis=(2, 3))
        R = jnp.sum(onehot, axis=(2, 3))
        loss = 1.0 - ((2 * I + eps) / (L + R + eps)).mean()
    else:
        I = jnp.sum(x * onehot, axis=(0, 2, 3))
        L = jnp.sum(x * x, axis=(0, 2, 3))
        R = jnp.sum(onehot * onehot, axis=(0, 2, 3))
        loss = 1.0 - ((2 * I + eps) / (L + R + eps)).mean()
    if return_hard_dice:
        pred = jnp.argmax(x, axis=1)
        pred_oh = jnp.transpose(jax.nn.one_hot(pred, num_classes, dtype=inputs.dtype),
                                (0, 3, 1, 2))
        HI = jnp.sum(pred_oh * onehot, axis=(0, 2, 3))
        HC = jnp.sum(pred_oh + onehot, axis=(0, 2, 3))
        return loss, (1.0 - (2 * HI + eps) / (HC + eps)).mean()
    return loss


if __name__ == "__main__":
    key = jax.random.PRNGKey(0)
    ks = jax.random.split(key, 10)

    # Case 1: C == 2 branch, no softmax, HW a multiple of 128.
    x = jax.random.normal(ks[0], (2, 2, 16, 16), dtype=jnp.float32)
    t = jax.random.randint(ks[1], (2, 16, 16), 0, 2, dtype=jnp.int32)
    got = dice_loss(x, t, num_classes=2)
    jax.block_until_ready(got)
    want = _dice_loss_ref(x, t, num_classes=2)
    assert jnp.allclose(got, want, atol=1e-5, rtol=1e-5)

    # Case 2: C != 2 branch with softmax + hard dice.
    x = jax.random.normal(ks[2], (2, 4, 16, 16), dtype=jnp.float32)
    t = jax.random.randint(ks[3], (2, 16, 16), 0, 4, dtype=jnp.int32)
    got = dice_loss(x, t, num_classes=4, return_hard_dice=True, softmax=True)
    jax.block_until_ready(got)
    want = _dice_loss_ref(x, t, num_classes=4, return_hard_dice=True, softmax=True)
    assert jnp.allclose(got[0], want[0], atol=1e-5, rtol=1e-5)
    assert jnp.allclose(got[1], want[1], atol=1e-5, rtol=1e-5)

    # Case 3: HW not a multiple of 128 -> lane-pad / validity-mask path.
    x = jax.random.normal(ks[4], (2, 3, 10, 10), dtype=jnp.float32)
    t = jax.random.randint(ks[5], (2, 10, 10), 0, 3, dtype=jnp.int32)
    got = dice_loss(x, t, num_classes=3, return_hard_dice=True, softmax=True)
    jax.block_until_ready(got)
    want = _dice_loss_ref(x, t, num_classes=3, return_hard_dice=True, softmax=True)
    assert jnp.allclose(got[0], want[0], atol=1e-5, rtol=1e-5)
    assert jnp.allclose(got[1], want[1], atol=1e-5, rtol=1e-5)

    # Case 4: N=1, multi-tile reduction, 2-way megacore chunking with an
    # uneven tile split (exercises the clamped tail tile + row masking).
    x = jax.random.normal(ks[6], (1, 4, 64, 80), dtype=jnp.float32)
    t = jax.random.randint(ks[7], (1, 64, 80), 0, 4, dtype=jnp.int32)
    got = dice_loss(x, t, num_classes=4, return_hard_dice=True, softmax=True,
                    block_rows=16)
    jax.block_until_ready(got)
    want = _dice_loss_ref(x, t, num_classes=4, return_hard_dice=True, softmax=True)
    assert jnp.allclose(got[0], want[0], atol=1e-5, rtol=1e-5)
    assert jnp.allclose(got[1], want[1], atol=1e-5, rtol=1e-5)

    # Case 5: odd batch (N=3), exact 2-way chunk split, hard dice w/o softmax.
    x = jax.random.normal(ks[8], (3, 2, 64, 64), dtype=jnp.float32)
    t = jax.random.randint(ks[9], (3, 64, 64), 0, 2, dtype=jnp.int32)
    got = dice_loss(x, t, num_classes=2, return_hard_dice=True, softmax=False,
                    block_rows=8)
    jax.block_until_ready(got)
    want = _dice_loss_ref(x, t, num_classes=2, return_hard_dice=True, softmax=False)
    assert jnp.allclose(got[0], want[0], atol=1e-5, rtol=1e-5)
    assert jnp.allclose(got[1], want[1], atol=1e-5, rtol=1e-5)

    print("KERNEL_OK")
</pallas_src>

<mosaic_0001>
module attributes {stable_mosaic.version = 11 : i64} {
  func.func @_dice_sums_kernel(%arg0: i32, %arg1: i32, %arg2: memref<1x2x2x128xf32, #tpu.memory_space<vmem>>, %arg3: memref<1x2x128xi32, #tpu.memory_space<vmem>>, %arg4: memref<1x3x2x2x128xf32, #tpu.memory_space<vmem>>) attributes {dimension_semantics = [#tpu.dimension_semantics<parallel>, #tpu.dimension_semantics<arbitrary>], iteration_bounds = array<i64: 2, 1>, scalar_prefetch = 0 : i64, scratch_operands = 0 : i64, tpu.core_type = #tpu.core_type<tc>, window_params = [{transform_indices = @transform_0, window_bounds = array<i64: 1, 2, 2, 128>}, {transform_indices = @transform_1, window_bounds = array<i64: 1, 2, 128>}, {transform_indices = @transform_2, window_bounds = array<i64: 1, 3, 2, 2, 128>}]} {
    %c0_i32 = arith.constant 0 : i32
    %0 = arith.cmpi eq, %arg1, %c0_i32 : i32
    %1 = arith.extui %0 : i1 to i32
    %c0_i32_0 = arith.constant 0 : i32
    %2 = arith.cmpi ne, %1, %c0_i32_0 : i32
    scf.if %2 {
      %cst = arith.constant 0.000000e+00 : f32
      %57 = vector.broadcast %cst : f32 to vector<3x2x2x128xf32>
      %c0_66 = arith.constant 0 : index
      %c0_67 = arith.constant 0 : index
      %c0_68 = arith.constant 0 : index
      %c0_69 = arith.constant 0 : index
      %c0_70 = arith.constant 0 : index
      %58 = vector.load %arg4[%c0_66, %c0_67, %c0_68, %c0_69, %c0_70] : memref<1x3x2x2x128xf32, #tpu.memory_space<vmem>>, vector<1x3x2x2x128xf32>
      %59 = vector.shape_cast %58 : vector<1x3x2x2x128xf32> to vector<3x2x2x128xf32>
      %60 = vector.shape_cast %57 : vector<3x2x2x128xf32> to vector<1x3x2x2x128xf32>
      tpu.vector_store %arg4[%c0_66, %c0_67, %c0_68, %c0_69, %c0_70], %60 {strides = array<i32>} : memref<1x3x2x2x128xf32, #tpu.memory_space<vmem>>, vector<1x3x2x2x128xf32>,
    } else {
    }
    %c0 = arith.constant 0 : index
    %c0_1 = arith.constant 0 : index
    %c0_2 = arith.constant 0 : index
    %c0_3 = arith.constant 0 : index
    %3 = vector.load %arg2[%c0, %c0_1, %c0_2, %c0_3] : memref<1x2x2x128xf32, #tpu.memory_space<vmem>>, vector<1x2x2x128xf32>
    %4 = vector.shape_cast %3 : vector<1x2x2x128xf32> to vector<2x2x128xf32>
    %c0_4 = arith.constant 0 : index
    %c0_5 = arith.constant 0 : index
    %c0_6 = arith.constant 0 : index
    %5 = vector.load %arg3[%c0_4, %c0_5, %c0_6] : memref<1x2x128xi32, #tpu.memory_space<vmem>>, vector<1x2x128xi32>
    %6 = vector.shape_cast %5 : vector<1x2x128xi32> to vector<2x128xi32>
    %c0_i32_7 = arith.constant 0 : i32
    %7 = vector.broadcast %c0_i32_7 : i32 to vector<2x128xi32>
    %8 = arith.cmpi eq, %6, %7 : vector<2x128xi32>
    %9 = arith.extui %8 : vector<2x128xi1> to vector<2x128xi32>
    %10 = arith.sitofp %9 : vector<2x128xi32> to vector<2x128xf32>
    %11 = vector.extract_strided_slice %4 {offsets = [0, 0, 0], sizes = [1, 2, 128], strides = [1, 1, 1]} : vector<2x2x128xf32> to vector<1x2x128xf32>
    %12 = vector.shape_cast %11 : vector<1x2x128xf32> to vector<2x128xf32>
    %c0_8 = arith.constant 0 : index
    %c0_9 = arith.constant 0 : index
    %c0_10 = arith.constant 0 : index
    %c0_11 = arith.constant 0 : index
    %c0_12 = arith.constant 0 : index
    %13 = vector.load %arg4[%c0_8, %c0_9, %c0_10, %c0_11, %c0_12] : memref<1x3x2x2x128xf32, #tpu.memory_space<vmem>>, vector<1x1x1x2x128xf32>
    %14 = vector.shape_cast %13 : vector<1x1x1x2x128xf32> to vector<2x128xf32>
    %15 = arith.mulf %12, %10 : vector<2x128xf32>
    %16 = arith.addf %14, %15 : vector<2x128xf32>
    %c0_13 = arith.constant 0 : index
    %c0_14 = arith.constant 0 : index
    %c0_15 = arith.constant 0 : index
    %c0_16 = arith.constant 0 : index
    %c0_17 = arith.constant 0 : index
    %17 = vector.load %arg4[%c0_13, %c0_14, %c0_15, %c0_16, %c0_17] : memref<1x3x2x2x128xf32, #tpu.memory_space<vmem>>, vector<1x1x1x2x128xf32>
    %18 = vector.shape_cast %17 : vector<1x1x1x2x128xf32> to vector<2x128xf32>
    %19 = vector.shape_cast %16 : vector<2x128xf32> to vector<1x1x1x2x128xf32>
    tpu.vector_store %arg4[%c0_13, %c0_14, %c0_15, %c0_16, %c0_17], %19 {strides = array<i32>} : memref<1x3x2x2x128xf32, #tpu.memory_space<vmem>>, vector<1x1x1x2x128xf32>,
    %c0_18 = arith.constant 0 : index
    %c1 = arith.constant 1 : index
    %c0_19 = arith.constant 0 : index
    %c0_20 = arith.constant 0 : index
    %c0_21 = arith.constant 0 : index
    %20 = vector.load %arg4[%c0_18, %c1, %c0_19, %c0_20, %c0_21] : memref<1x3x2x2x128xf32, #tpu.memory_space<vmem>>, vector<1x1x1x2x128xf32>
    %21 = vector.shape_cast %20 : vector<1x1x1x2x128xf32> to vector<2x128xf32>
    %22 = arith.addf %21, %12 : vector<2x128xf32>
    %c0_22 = arith.constant 0 : index
    %c1_23 = arith.constant 1 : index
    %c0_24 = arith.constant 0 : index
    %c0_25 = arith.constant 0 : index
    %c0_26 = arith.constant 0 : index
    %23 = vector.load %arg4[%c0_22, %c1_23, %c0_24, %c0_25, %c0_26] : memref<1x3x2x2x128xf32, #tpu.memory_space<vmem>>, vector<1x1x1x2x128xf32>
    %24 = vector.shape_cast %23 : vector<1x1x1x2x128xf32> to vector<2x128xf32>
    %25 = vector.shape_cast %22 : vector<2x128xf32> to vector<1x1x1x2x128xf32>
    tpu.vector_store %arg4[%c0_22, %c1_23, %c0_24, %c0_25, %c0_26], %25 {strides = array<i32>} : memref<1x3x2x2x128xf32, #tpu.memory_space<vmem>>, vector<1x1x1x2x128xf32>,
    %c0_27 = arith.constant 0 : index
    %c2 = arith.constant 2 : index
    %c0_28 = arith.constant 0 : index
    %c0_29 = arith.constant 0 : index
    %c0_30 = arith.constant 0 : index
    %26 = vector.load %arg4[%c0_27, %c2, %c0_28, %c0_29, %c0_30] : memref<1x3x2x2x128xf32, #tpu.memory_space<vmem>>, vector<1x1x1x2x128xf32>
    %27 = vector.shape_cast %26 : vector<1x1x1x2x128xf32> to vector<2x128xf32>
    %28 = arith.addf %27, %10 : vector<2x128xf32>
    %c0_31 = arith.constant 0 : index
    %c2_32 = arith.constant 2 : index
    %c0_33 = arith.constant 0 : index
    %c0_34 = arith.constant 0 : index
    %c0_35 = arith.constant 0 : index
    %29 = vector.load %arg4[%c0_31, %c2_32, %c0_33, %c0_34, %c0_35] : memref<1x3x2x2x128xf32, #tpu.memory_space<vmem>>, vector<1x1x1x2x128xf32>
    %30 = vector.shape_cast %29 : vector<1x1x1x2x128xf32> to vector<2x128xf32>
    %31 = vector.shape_cast %28 : vector<2x128xf32> to vector<1x1x1x2x128xf32>
    tpu.vector_store %arg4[%c0_31, %c2_32, %c0_33, %c0_34, %c0_35], %31 {strides = array<i32>} : memref<1x3x2x2x128xf32, #tpu.memory_space<vmem>>, vector<1x1x1x2x128xf32>,
    %c1_i32 = arith.constant 1 : i32
    %32 = vector.broadcast %c1_i32 : i32 to vector<2x128xi32>
    %33 = arith.cmpi eq, %6, %32 : vector<2x128xi32>
    %34 = arith.extui %33 : vector<2x128xi1> to vector<2x128xi32>
    %35 = arith.sitofp %34 : vector<2x128xi32> to vector<2x128xf32>
    %36 = vector.extract_strided_slice %4 {offsets = [1, 0, 0], sizes = [1, 2, 128], strides = [1, 1, 1]} : vector<2x2x128xf32> to vector<1x2x128xf32>
    %37 = vector.shape_cast %36 : vector<1x2x128xf32> to vector<2x128xf32>
    %c0_36 = arith.constant 0 : index
    %c0_37 = arith.constant 0 : index
    %c1_38 = arith.constant 1 : index
    %c0_39 = arith.constant 0 : index
    %c0_40 = arith.constant 0 : index
    %38 = vector.load %arg4[%c0_36, %c0_37, %c1_38, %c0_39, %c0_40] : memref<1x3x2x2x128xf32, #tpu.memory_space<vmem>>, vector<1x1x1x2x128xf32>
    %39 = vector.shape_cast %38 : vector<1x1x1x2x128xf32> to vector<2x128xf32>
    %40 = arith.mulf %37, %35 : vector<2x128xf32>
    %41 = arith.addf %39, %40 : vector<2x128xf32>
    %c0_41 = arith.constant 0 : index
    %c0_42 = arith.constant 0 : index
    %c1_43 = arith.constant 1 : index
    %c0_44 = arith.constant 0 : index
    %c0_45 = arith.constant 0 : index
    %42 = vector.load %arg4[%c0_41, %c0_42, %c1_43, %c0_44, %c0_45] : memref<1x3x2x2x128xf32, #tpu.memory_space<vmem>>, vector<1x1x1x2x128xf32>
    %43 = vector.shape_cast %42 : vector<1x1x1x2x128xf32> to vector<2x128xf32>
    %44 = vector.shape_cast %41 : vector<2x128xf32> to vector<1x1x1x2x128xf32>
    tpu.vector_store %arg4[%c0_41, %c0_42, %c1_43, %c0_44, %c0_45], %44 {strides = array<i32>} : memref<1x3x2x2x128xf32, #tpu.memory_space<vmem>>, vector<1x1x1x2x128xf32>,
    %c0_46 = arith.constant 0 : index
    %c1_47 = arith.constant 1 : index
    %c1_48 = arith.constant 1 : index
    %c0_49 = arith.constant 0 : index
    %c0_50 = arith.constant 0 : index
    %45 = vector.load %arg4[%c0_46, %c1_47, %c1_48, %c0_49, %c0_50] : memref<1x3x2x2x128xf32, #tpu.memory_space<vmem>>, vector<1x1x1x2x128xf32>
    %46 = vector.shape_cast %45 : vector<1x1x1x2x128xf32> to vector<2x128xf32>
    %47 = arith.addf %46, %37 : vector<2x128xf32>
    %c0_51 = arith.constant 0 : index
    %c1_52 = arith.constant 1 : index
    %c1_53 = arith.constant 1 : index
    %c0_54 = arith.constant 0 : index
    %c0_55 = arith.constant 0 : index
    %48 = vector.load %arg4[%c0_51, %c1_52, %c1_53, %c0_54, %c0_55] : memref<1x3x2x2x128xf32, #tpu.memory_space<vmem>>, vector<1x1x1x2x128xf32>
    %49 = vector.shape_cast %48 : vector<1x1x1x2x128xf32> to vector<2x128xf32>
    %50 = vector.shape_cast %47 : vector<2x128xf32> to vector<1x1x1x2x128xf32>
    tpu.vector_store %arg4[%c0_51, %c1_52, %c1_53, %c0_54, %c0_55], %50 {strides = array<i32>} : memref<1x3x2x2x128xf32, #tpu.memory_space<vmem>>, vector<1x1x1x2x128xf32>,
    %c0_56 = arith.constant 0 : index
    %c2_57 = arith.constant 2 : index
    %c1_58 = arith.constant 1 : index
    %c0_59 = arith.constant 0 : index
    %c0_60 = arith.constant 0 : index
    %51 = vector.load %arg4[%c0_56, %c2_57, %c1_58, %c0_59, %c0_60] : memref<1x3x2x2x128xf32, #tpu.memory_space<vmem>>, vector<1x1x1x2x128xf32>
    %52 = vector.shape_cast %51 : vector<1x1x1x2x128xf32> to vector<2x128xf32>
    %53 = arith.addf %52, %35 : vector<2x128xf32>
    %c0_61 = arith.constant 0 : index
    %c2_62 = arith.constant 2 : index
    %c1_63 = arith.constant 1 : index
    %c0_64 = arith.constant 0 : index
    %c0_65 = arith.constant 0 : index
    %54 = vector.load %arg4[%c0_61, %c2_62, %c1_63, %c0_64, %c0_65] : memref<1x3x2x2x128xf32, #tpu.memory_space<vmem>>, vector<1x1x1x2x128xf32>
    %55 = vector.shape_cast %54 : vector<1x1x1x2x128xf32> to vector<2x128xf32>
    %56 = vector.shape_cast %53 : vector<2x128xf32> to vector<1x1x1x2x128xf32>
    tpu.vector_store %arg4[%c0_61, %c2_62, %c1_63, %c0_64, %c0_65], %56 {strides = array<i32>} : memref<1x3x2x2x128xf32, #tpu.memory_space<vmem>>, vector<1x1x1x2x128xf32>,
    return
  }
  func.func @transform_0(%arg0: i32, %arg1: i32) -> (i32, i32, i32, i32) {
    %c0_i32 = arith.constant 0 : i32
    %c0_i32_0 = arith.constant 0 : i32
    %c0_i32_1 = arith.constant 0 : i32
    return %arg0, %c0_i32, %arg1, %c0_i32_0 : i32, i32, i32, i32
  }
  func.func @transform_1(%arg0: i32, %arg1: i32) -> (i32, i32, i32) {
    %c0_i32 = arith.constant 0 : i32
    %c0_i32_0 = arith.constant 0 : i32
    return %arg0, %arg1, %c0_i32 : i32, i32, i32
  }
  func.func @transform_2(%arg0: i32, %arg1: i32) -> (i32, i32, i32, i32, i32) {
    %c0_i32 = arith.constant 0 : i32
    %c0_i32_0 = arith.constant 0 : i32
    %c0_i32_1 = arith.constant 0 : i32
    %c0_i32_2 = arith.constant 0 : i32
    %c0_i32_3 = arith.constant 0 : i32
    return %arg0, %c0_i32, %c0_i32_0, %c0_i32_1, %c0_i32_2 : i32, i32, i32, i32, i32
  }
}

</mosaic_0001>

<llo_original>
// kernel: tpu_custom_call.1
$region0: #{tpu_custom_call.1}
  #allocation0 [shape = 'u32[]', space=smem, size = 0x4, offset = 0x4, fixed_abs, tag = 'smem constant byte address 0x4 - core index']
  #allocation1 [shape = 'u32[72,128]{1,0:T(1,128)}', space=vmem, size = 0x9000, scoped, tag = 'internal scratch']
  %s0 = inlined_call_operand.hbm [shape: f32[2,2,2,128], index: 0, kind: input, shape index: {}]
  %s1 = inlined_call_operand.hbm [shape: s32[2,2,128], index: 1, kind: input, shape index: {}]
  %s2 = inlined_call_operand.hbm [shape: f32[2,3,2,2,128], index: 2, kind: output, shape index: {}]
  %s3 = sld [smem:[#allocation0]]
  $region53: #{tpu_custom_call.1} parent=0
    _
  %s5 = ssub.s32 1, %s3
  %s6 = scalar_select 0, %s5, %s3
  $region1: #{tpu_custom_call.1} parent=0
    #allocation2 [shape = 'u8[4096]{0}', space=vmem, size = 0x1000, scoped, tag = 'input window, operand 0']
    #allocation3 [shape = 's32[2]{0}', space=sflag, size = 0x8, scoped, tag = 'scoped memory for tpu_custom_call.1']
    #allocation4 [shape = 's32[2]{0}', space=sflag, size = 0x8, scoped, tag = 'scoped memory for tpu_custom_call.1']
    #allocation5 [shape = 'u8[2048]{0}', space=vmem, size = 0x800, scoped, tag = 'input window, operand 1']
    #allocation6 [shape = 's32[2]{0}', space=sflag, size = 0x8, scoped, tag = 'scoped memory for tpu_custom_call.1']
    #allocation7 [shape = 'u8[12288]{0}', space=vmem, size = 0x3000, scoped, tag = 'output window, operand 0']
    %7 = vsyncpa [#allocation3], 0
    %s8 = scalar_lea.sflag [#allocation3], 1
    %9 = vsyncpa %s8, 0
    %10 = vsyncpa [#allocation6], 0
    %s11 = scalar_lea.sflag [#allocation6], 1
    %12 = vsyncpa %s11, 0
    %13 = vsyncpa [#allocation4], 0
    %s14 = scalar_lea.sflag [#allocation4], 1
    %15 = vsyncpa %s14, 0
    loop: start=0, step=1, limit=4
    $region2: #{tpu_custom_call.1} parent=1 // loop_pre_header
      _
    $region3: #{tpu_custom_call.1} parent=1 // loop_header
      %s17 = sphi 0, %s21
      %p18 = scmp.ge.s32.totalorder %s17, 4
      %s24 = sphi 0, %s36
      %s25 = sphi 0, %s32
      %s26 = sphi 0, %s24
      %s27 = sphi 0, %s25
      %s28 = sphi 0, %s26
      %s29 = sphi 0, %s27
      %s41 = sphi 0, %s43
      %s44 = sphi 0, %s41
      %s45 = sphi 0, %s44
      %s61 = sphi 0, %s45
      %s69 = sphi 0, %s71
      %s72 = sphi 0, %s69
      %s73 = sphi 0, %s72
      %s89 = sphi 0, %s73
      %s95 = sphi 0, %s97
      %s98 = sphi 0, %s95
      %s99 = sphi 0, %s98
      %s115 = sphi 0, %s99
    $region4: #{tpu_custom_call.1} parent=1 // loop_header_branch
      %20 = sbr.rel (%p18) target = $region8
    $region5: #{tpu_custom_call.1} parent=1 // loop_body
      %s22 = ssub.s32 %s17, 1
      %s23 = ssub.s32 %s17, 2
      %s30 = sadd.s32 1, %s25
      %p31 = scmp.ge.s32.totalorder %s30, 1
      %s32 = scalar_select %p31, 0, %s30
      %s33 = sadd.s32 1, %s24
      %s34 = scalar_select %p31, %s33, %s24
      %p35 = scmp.ge.s32.totalorder %s34, 2
      %s36 = scalar_select %p35, 0, %s34
      %s37 = ssub.s32 %s24, %s36
      %s38 = ssub.s32 %s25, %s32
      %s39 = sor.u32 %s37, %s38
      %p40 = scmp.eq.s32.totalorder %s39, 0
      %s42 = sadd.s32 %s41, 1
      %s43 = scalar_select %p40, %s41, %s42
      %p46 = pneg %p40
      %p47 = scmp.eq.s32.totalorder %s17, 1
      %p48 = por %p46, %p47
      %p49 = scmp.ne.s32.totalorder %s41, %s44
      %p50 = scmp.eq.s32.totalorder %s17, 0
      %p51 = por %p49, %p50
      %p52 = scmp.ne.s32.totalorder %s41, %s44
      %p53 = scmp.eq.s32.totalorder %s22, 1
      %p54 = por %p52, %p53
      %p55 = scmp.ne.s32.totalorder %s44, %s45
      %p56 = scmp.eq.s32.totalorder %s22, 0
      %p57 = por %p55, %p56
      %p58 = scmp.ne.s32.totalorder %s44, %s45
      %p59 = scmp.eq.s32.totalorder %s23, 1
      %p60 = por %p58, %p59
      %p62 = scmp.ne.s32.totalorder %s45, %s61
      %p63 = scmp.eq.s32.totalorder %s23, 0
      %p64 = por %p62, %p63
      %s65 = ssub.s32 %s24, %s36
      %s66 = ssub.s32 %s25, %s32
      %s67 = sor.u32 %s65, %s66
      %p68 = scmp.eq.s32.totalorder %s67, 0
      %s70 = sadd.s32 %s69, 1
      %s71 = scalar_select %p68, %s69, %s70
      %p74 = pneg %p68
      %p75 = scmp.eq.s32.totalorder %s17, 1
      %p76 = por %p74, %p75
      %p77 = scmp.ne.s32.totalorder %s69, %s72
      %p78 = scmp.eq.s32.totalorder %s17, 0
      %p79 = por %p77, %p78
      %p80 = scmp.ne.s32.totalorder %s69, %s72
      %p81 = scmp.eq.s32.totalorder %s22, 1
      %p82 = por %p80, %p81
      %p83 = scmp.ne.s32.totalorder %s72, %s73
      %p84 = scmp.eq.s32.totalorder %s22, 0
      %p85 = por %p83, %p84
      %p86 = scmp.ne.s32.totalorder %s72, %s73
      %p87 = scmp.eq.s32.totalorder %s23, 1
      %p88 = por %p86, %p87
      %p90 = scmp.ne.s32.totalorder %s73, %s89
      %p91 = scmp.eq.s32.totalorder %s23, 0
      %p92 = por %p90, %p91
      %s93 = ssub.s32 %s24, %s36
      %p94 = scmp.eq.s32.totalorder %s93, 0
      %s96 = sadd.s32 %s95, 1
      %s97 = scalar_select %p94, %s95, %s96
      %p100 = pneg %p94
      %p101 = scmp.eq.s32.totalorder %s17, 1
      %p102 = por %p100, %p101
      %p103 = scmp.ne.s32.totalorder %s95, %s98
      %p104 = scmp.eq.s32.totalorder %s17, 0
      %p105 = por %p103, %p104
      %p106 = scmp.ne.s32.totalorder %s95, %s98
      %p107 = scmp.eq.s32.totalorder %s22, 1
      %p108 = por %p106, %p107
      %p109 = scmp.ne.s32.totalorder %s98, %s99
      %p110 = scmp.eq.s32.totalorder %s22, 0
      %p111 = por %p109, %p110
      %p112 = scmp.ne.s32.totalorder %s98, %s99
      %p113 = scmp.eq.s32.totalorder %s23, 1
      %p114 = por %p112, %p113
      %p116 = scmp.ne.s32.totalorder %s99, %s115
      %p117 = scmp.eq.s32.totalorder %s23, 0
      %p118 = por %p116, %p117
      %p119 = scmp.le.s32.totalorder 1, %s17
      %p120 = scmp.lt.s32.totalorder %s17, 3
      %p121 = pnand %p119, %p120
      %p122 = pneg %p121
      // Predicated region
      $region9: #{tpu_custom_call.1} parent=5 // pred_check
        _
      $region10: #{tpu_custom_call.1} parent=5 // pred_check_branch
        %124 = sbr.rel (%p121) target = $region12
      $region11: #{tpu_custom_call.1} parent=5 // pred_region
        %s125 = ssub.s32 %s17, 1
      $region12: #{tpu_custom_call.1} parent=5 // pred_fallthru
        _
      %p126 = scmp.lt.s32.totalorder %s17, 2
      // Predicated region
      $region13: #{tpu_custom_call.1} parent=5 // pred_check
        %p127 = pneg %p126
      $region14: #{tpu_custom_call.1} parent=5 // pred_check_branch
        %129 = sbr.rel (%p127) target = $region16
      $region15: #{tpu_custom_call.1} parent=5 // pred_region
        // Predicated region
        $region17: #{tpu_custom_call.1} parent=15 // pred_check
          %p130 = pneg %p51
        $region18: #{tpu_custom_call.1} parent=15 // pred_check_branch
          %132 = sbr.rel (%p130) target = $region20
        $region19: #{tpu_custom_call.1} parent=15 // pred_region
          %s133 = sand.u32 %s41, 1
          %s134 = scalar_lea.sflag [#allocation3], %s133
          %s135 = sand.u32 %s41, 1
          %s136 = smul.addr %s135, 4
          %s137 = scalar_lea.vmem [#allocation2], %s136
          %139 = vsyncadd %s134, 0
          %s140 = smul.addr %s24, 2
          %s141 = sadd.s32 %s25, %s140
          %s142 = smul.addr %s141, 2
          %s143 = scalar_lea.hbm %s0, %s142
          %s144 = sshll.u32 %s143, 4
          %s145 = int_to_ptr.hbm [resolvable:$true] %s144
          %s146 = sshll.u32 %s137, 4
          %s147 = int_to_ptr.vmem [resolvable:$true] %s146
          %152 = dma.hbm_to_vmem [thread:$0]  %s145, 64, %s147, %s134, 32, 32, 2
        $region20: #{tpu_custom_call.1} parent=15 // pred_fallthru
          _
        // Predicated region
        $region21: #{tpu_custom_call.1} parent=15 // pred_check
          %p153 = pneg %p79
        $region22: #{tpu_custom_call.1} parent=15 // pred_check_branch
          %155 = sbr.rel (%p153) target = $region24
        $region23: #{tpu_custom_call.1} parent=15 // pred_region
          %s156 = sand.u32 %s69, 1
          %s157 = scalar_lea.sflag [#allocation6], %s156
          %s158 = sand.u32 %s69, 1
          %s159 = smul.addr %s158, 2
          %s160 = scalar_lea.vmem [#allocation5], %s159
          %162 = vsyncadd %s157, 0
          %s163 = sadd.s32 %s25, %s24
          %s164 = smul.addr %s163, 2
          %s165 = scalar_lea.hbm %s1, %s164
          %s167 = sshll.u32 %s165, 4
          %s168 = int_to_ptr.hbm [resolvable:$true] %s167
          %s169 = sshll.u32 %s160, 4
          %s170 = int_to_ptr.vmem [resolvable:$true] %s169
          %172 = dma.hbm_to_vmem [thread:$0]  %s168, 32, %s170, %s157
        $region24: #{tpu_custom_call.1} parent=15 // pred_fallthru
          _
      $region16: #{tpu_custom_call.1} parent=5 // pred_fallthru
        _
      %p173 = scmp.le.s32.totalorder 1, %s17
      %p174 = scmp.lt.s32.totalorder %s17, 3
      %p175 = pnand %p173, %p174
      %p176 = pneg %p175
      // Predicated region
      $region25: #{tpu_custom_call.1} parent=5 // pred_check
        _
      $region26: #{tpu_custom_call.1} parent=5 // pred_check_branch
        %178 = sbr.rel (%p175) target = $region28
      $region27: #{tpu_custom_call.1} parent=5 // pred_region
        %s179 = ssub.s32 %s17, 1
        %s180 = sand.u32 %s44, 1
        %s181 = scalar_lea.sflag [#allocation3], %s180
        %s182 = sand.u32 %s44, 1
        %s183 = smul.addr %s182, 4
        %s184 = scalar_lea.vmem [#allocation2], %s183
        // Predicated region
        $region29: #{tpu_custom_call.1} parent=27 // pred_check
          %p185 = pneg %p57
        $region30: #{tpu_custom_call.1} parent=27 // pred_check_branch
          %187 = sbr.rel (%p185) target = $region32
        $region31: #{tpu_custom_call.1} parent=27 // pred_region
          %189 = dma.done %s181, 64
        $region32: #{tpu_custom_call.1} parent=27 // pred_fallthru
          _
        %s190 = sand.u32 %s72, 1
        %s191 = scalar_lea.sflag [#allocation6], %s190
        %s192 = sand.u32 %s72, 1
        %s193 = smul.addr %s192, 2
        %s194 = scalar_lea.vmem [#allocation5], %s193
        // Predicated region
        $region33: #{tpu_custom_call.1} parent=27 // pred_check
          %p195 = pneg %p85
        $region34: #{tpu_custom_call.1} parent=27 // pred_check_branch
          %197 = sbr.rel (%p195) target = $region36
        $region35: #{tpu_custom_call.1} parent=27 // pred_region
          %199 = dma.done %s191, 32
        $region36: #{tpu_custom_call.1} parent=27 // pred_fallthru
          _
        %s200 = sand.u32 %s44, 1
        %s201 = scalar_lea.sflag [#allocation3], %s200
        %s202 = sand.u32 %s44, 1
        %s203 = smul.addr %s202, 4
        %s204 = scalar_lea.vmem [#allocation2], %s203
        %p205 = pneg %p57
        %p206 = pneg %p54
        %s207 = sand.u32 %s72, 1
        %s208 = scalar_lea.sflag [#allocation6], %s207
        %s209 = sand.u32 %s72, 1
        %s210 = smul.addr %s209, 2
        %s211 = scalar_lea.vmem [#allocation5], %s210
        %p212 = pneg %p85
        %p213 = pneg %p82
        %p214 = pneg %p111
        %p215 = pneg %p108
        %s216 = sand.u32 %s98, 1
        %s217 = scalar_lea.sflag [#allocation4], %s216
        %s218 = sand.u32 %s98, 1
        %s219 = smul.addr %s218, 12
        %s220 = scalar_lea.vmem [#allocation7], %s219
        %p221 = scmp.eq.s32.totalorder %s27, 0
        // Predicated region
        $region37: #{tpu_custom_call.1} parent=27 // pred_check
          %p222 = pneg %p221
        $region38: #{tpu_custom_call.1} parent=27 // pred_check_branch
          %224 = sbr.rel (%p222) target = $region40
        $region39: #{tpu_custom_call.1} parent=27 // pred_region
          %225 = vst [vmem:[%s220] sm:$0x3] 0.0
          %226 = vst [vmem:[%s220 + $0x2] sm:$0x3] 0.0
          %227 = vst [vmem:[%s220 + $0x4] sm:$0x3] 0.0
          %228 = vst [vmem:[%s220 + $0x6] sm:$0x3] 0.0
          %229 = vst [vmem:[%s220 + $0x8] sm:$0x3] 0.0
          %230 = vst [vmem:[%s220 + $0xa] sm:$0x3] 0.0
        $region40: #{tpu_custom_call.1} parent=27 // pred_fallthru
          _
        %v231 = vld [vmem:[%s184] sm:$0x3]
        %v232 = vld [vmem:[%s184 + $0x2] sm:$0x3]
        %v233 = vld [vmem:[%s194] sm:$0x3]
        %vm234 = vcmp.eq.s32.totalorder %v233, 0
        %v235 = vsel %vm234, 1, 0
        %v236 = vcvt.s32.f32 %v235
        %v237 = vld [vmem:[%s220] sm:$0x3]
        %v238 = vmul.f32 %v231, %v236
        %v239 = vadd.f32 %v237, %v238
        %240 = vst [vmem:[%s220] sm:$0x3] %v239
        %s241 = scalar_lea.vmem %s220, 4 [#allocation7]
        %v242 = vld [vmem:[%s241] sm:$0x3]
        %v243 = vadd.f32 %v242, %v231
        %244 = vst [vmem:[%s241] sm:$0x3] %v243
        %s245 = scalar_lea.vmem %s220, 8 [#allocation7]
        %v246 = vld [vmem:[%s245] sm:$0x3]
        %v247 = vadd.f32 %v246, %v236
        %248 = vst [vmem:[%s245] sm:$0x3] %v247
        %vm249 = vcmp.eq.s32.totalorder %v233, 1
        %v250 = vsel %vm249, 1, 0
        %v251 = vcvt.s32.f32 %v250
        %s252 = scalar_lea.vmem %s220, 2 [#allocation7]
        %v253 = vld [vmem:[%s252] sm:$0x3]
        %v254 = vmul.f32 %v232, %v251
        %v255 = vadd.f32 %v253, %v254
        %256 = vst [vmem:[%s252] sm:$0x3] %v255
        %s257 = scalar_lea.vmem %s220, 6 [#allocation7]
        %v258 = vld [vmem:[%s257] sm:$0x3]
        %v259 = vadd.f32 %v258, %v232
        %260 = vst [vmem:[%s257] sm:$0x3] %v259
        %s261 = scalar_lea.vmem %s220, 10 [#allocation7]
        %v262 = vld [vmem:[%s261] sm:$0x3]
        %v263 = vadd.f32 %v262, %v251
        %264 = vst [vmem:[%s261] sm:$0x3] %v263
        %s265 = sand.u32 %s98, 1
        %s266 = scalar_lea.sflag [#allocation4], %s265
        %s267 = sand.u32 %s98, 1
        %s268 = smul.addr %s267, 12
        %s269 = scalar_lea.vmem [#allocation7], %s268
        // Predicated region
        $region41: #{tpu_custom_call.1} parent=27 // pred_check
          %p270 = pneg %p108
        $region42: #{tpu_custom_call.1} parent=27 // pred_check_branch
          %272 = sbr.rel (%p270) target = $region44
        $region43: #{tpu_custom_call.1} parent=27 // pred_region
          %274 = vsyncadd %s266, 0
          %s275 = smul.addr %s26, 6
          %s276 = smul.addr %s275, 2
          %s277 = scalar_lea.hbm %s2, %s276
          %s278 = sshll.u32 %s269, 4
          %s279 = int_to_ptr.vmem [resolvable:$true] %s278
          %s280 = sshll.u32 %s277, 4
          %s281 = int_to_ptr.hbm [resolvable:$true] %s280
          %286 = dma.vmem_to_hbm [thread:$0]  %s279, 192, %s281, %s266, 32, 32, 2
        $region44: #{tpu_custom_call.1} parent=27 // pred_fallthru
          _
      $region28: #{tpu_custom_call.1} parent=5 // pred_fallthru
        _
      %p287 = scmp.le.s32.totalorder 2, %s17
      // Predicated region
      $region45: #{tpu_custom_call.1} parent=5 // pred_check
        %p288 = pneg %p287
      $region46: #{tpu_custom_call.1} parent=5 // pred_check_branch
        %290 = sbr.rel (%p288) target = $region48
      $region47: #{tpu_custom_call.1} parent=5 // pred_region
        %s291 = ssub.s32 %s17, 2
        // Predicated region
        $region49: #{tpu_custom_call.1} parent=47 // pred_check
          %p292 = pneg %p114
        $region50: #{tpu_custom_call.1} parent=47 // pred_check_branch
          %294 = sbr.rel (%p292) target = $region52
        $region51: #{tpu_custom_call.1} parent=47 // pred_region
          %s295 = sand.u32 %s99, 1
          %s296 = scalar_lea.sflag [#allocation4], %s295
          %s297 = sand.u32 %s99, 1
          %s298 = smul.addr %s297, 12
          %s299 = scalar_lea.vmem [#allocation7], %s298
          %301 = dma.done %s296, 192
        $region52: #{tpu_custom_call.1} parent=47 // pred_fallthru
          _
      $region48: #{tpu_custom_call.1} parent=5 // pred_fallthru
        _
    $region6: #{tpu_custom_call.1} parent=1 // loop_footer
      %s21 = sadd.s32 1, %s17
    $region7: #{tpu_custom_call.1} parent=1 // loop_footer_branch
      %16 = sbr.rel target = $region3
    $region8: #{tpu_custom_call.1} parent=1 // loop_exit
      _
    %302 = vsyncpa [#allocation3], 1
    %s303 = scalar_lea.sflag [#allocation3], 1
    %304 = vsyncpa %s303, 1
    %305 = vsyncpa [#allocation6], 1
    %s306 = scalar_lea.sflag [#allocation6], 1
    %307 = vsyncpa %s306, 1
    %308 = vsyncpa [#allocation4], 1
    %s309 = scalar_lea.sflag [#allocation4], 1
    %310 = vsyncpa %s309, 1

</llo_original>
